<compile_context>
chip_gen: v7x
topology: tpu7x:2x2x1
jax: 0.10.0
libtpu: 0.0.40
codegen_flags: <defaults>
</compile_context>

<pallas_src>
import functools

import numpy as np
import jax
import jax.numpy as jnp
from jax.experimental import pallas as pl
from jax.experimental.pallas import tpu as pltpu
from jax.scipy.special import gammaln, digamma

# ----------------------------------------------------------------------------
# Module configuration (UnetLoss defaults, with p_p_name='dirichlet' so the
# forward pass is well-defined: uses the center-focused Dirichlet prior).
# ----------------------------------------------------------------------------
BETA = 1.0          # registered buffer; unused in forward (kept for parity)
EPS = 1e-05
P_P_SCALE = 1e-4
P_BG_SCALE = 1e-4
P_BG_CONC = 1.0     # gamma prior concentration
P_BG_RATE = 1.0     # gamma prior rate
PRIOR_SHAPE = (3, 21, 21)
PROFILE_SIZE = PRIOR_SHAPE[0] * PRIOR_SHAPE[1] * PRIOR_SHAPE[2]  # 1323


def create_center_focused_dirichlet_prior(shape=(3, 21, 21), base_alpha=0.1,
                                          center_alpha=100.0, decay_factor=1,
                                          peak_percentage=0.1):
    channels, height, width = shape
    alpha_3d = np.ones(shape, dtype=np.float64) * base_alpha
    center_c = channels // 2
    center_h = height // 2
    center_w = width // 2
    for c in range(channels):
        for h in range(height):
            for w in range(width):
                dist_c = abs(c - center_c) / (channels / 2)
                dist_h = abs(h - center_h) / (height / 2)
                dist_w = abs(w - center_w) / (width / 2)
                distance = np.sqrt(dist_c ** 2 + dist_h ** 2 + dist_w ** 2) / np.sqrt(3)
                if distance < peak_percentage * 5:
                    alpha_value = center_alpha - (center_alpha - base_alpha) * (
                        distance / (peak_percentage * 5)) ** decay_factor
                    alpha_3d[c, h, w] = alpha_value
    return jnp.asarray(alpha_3d.reshape(-1), dtype=jnp.float32)


# ----------------------------------------------------------------------------
# VMEM footprint model + batch-tile chooser.
# ----------------------------------------------------------------------------
def _round_up(x, m):
    return ((x + m - 1) // m) * m


def _block_vmem_bytes(tb, S, P, rate_itemsize):
    """Padded, double-buffered VMEM footprint of one grid step."""
    p_pad = _round_up(P, 128)
    # sub-32-bit dtypes pack along sublanes: f32 -> 8-row tiles, bf16 -> 16, i8 -> 32
    sub_mult = 8 * max(1, 4 // max(1, rate_itemsize))
    rate_tile = tb * _round_up(max(S, 1), sub_mult) * p_pad * rate_itemsize
    side_tile = 2 * _round_up(tb, 8) * p_pad * 4          # wc + mask (f32)
    out_tile = _round_up(tb, 8) * 128 * 4                 # (tb, 1) output block
    return 2 * (rate_tile + side_tile + out_tile)          # double-buffered


def _choose_tb(B, S, P, rate_itemsize, budget_bytes):
    """Largest batch slab (multiple of 8, or the whole batch) fitting the budget."""
    if B <= 8:
        return B                                           # whole batch, single step
    cands = [c for c in (8, 16, 32, 64, 128, 256) if c < B]
    if B <= 256:
        cands.append(B)                                    # prefer one whole-batch step
    fitting = [c for c in cands if _block_vmem_bytes(c, S, P, rate_itemsize) <= budget_bytes]
    return max(fitting) if fitting else min(cands)


# ----------------------------------------------------------------------------
# Pallas kernel: fused masked Poisson log-likelihood partial sum per batch row.
#
#   out[b] = -(1/S) * sum_p ( wc[b,p]   * sum_s log(rate[b,s,p]+eps)
#                             - mask[b,p] * (sum_s rate[b,s,p] + S*eps) )
#
# The constant-over-S term  +sum_p mask[b,p]*lgamma(counts[b,p]+1)  is added
# back in the wrapper.
# ----------------------------------------------------------------------------
def _poisson_nll_kernel(rate_ref, wc_ref, mask_ref, out_ref, *, eps, s_eps, neg_inv_s):
    # rate_ref: (TB, S, P)   native dtype, cast to f32 in-register
    # wc_ref:   (TB, P)      counts * mask (f32)
    # mask_ref: (TB, P)      mask (f32)
    # out_ref:  (TB, 1)      f32
    lam = rate_ref[...].astype(jnp.float32)                 # (TB, S, P)
    sum_log = jnp.sum(jnp.log(lam + eps), axis=1)           # (TB, P)  EUP log + sublane reduce
    sum_lam = jnp.sum(lam, axis=1) + s_eps                  # (TB, P)  eps folded as S*eps
    per_pix = wc_ref[...] * sum_log - mask_ref[...] * sum_lam   # (TB, P)
    out_ref[...] = neg_inv_s * jnp.sum(per_pix, axis=1, keepdims=True)   # (TB, 1)


def poisson_neg_ll(rate, counts, masks_2d, eps=EPS, tb=None):
    """neg_ll_batch[b] = sum_p mask[b,p] * (-mean_s PoissonLogProb(rate[b,s,p]+eps, counts[b,p]))"""
    B, S, P = rate.shape
    counts_f = counts.astype(jnp.float32)
    mask_f = masks_2d.astype(jnp.float32)

    wc = counts_f * mask_f                                   # (B, P) counts with mask folded in
    # Constant-over-samples lgamma(k+1) term, masked and reduced outside the kernel
    # (no lgamma lowering in Mosaic, and it would be S-times-redundant VALU work).
    lgk_masked_sum = jnp.sum(mask_f * gammaln(counts_f + 1.0), axis=-1)  # (B,)

    # Per-generation VMEM budget: query physical VMEM, fall back to the smallest
    # per-core size across supported chips (v7x: 64 MiB).
    try:
        vmem_phys = int(pltpu.get_tpu_info().vmem_capacity_bytes)
    except Exception:
        vmem_phys = 64 << 20
    vmem_limit = int(min(vmem_phys * 3 // 4, 96 << 20))      # v5e/v6e -> 96 MiB, v7x -> 48 MiB
    budget = int(vmem_limit * 0.8)                           # headroom for compiler scratch

    itemsize = jnp.dtype(rate.dtype).itemsize
    if tb is None:
        tb = _choose_tb(B, S, P, itemsize, budget)
    grid_b = pl.cdiv(B, tb)

    kernel = functools.partial(_poisson_nll_kernel,
                               eps=float(eps),
                               s_eps=float(S) * float(eps),
                               neg_inv_s=-1.0 / float(S))
    out = pl.pallas_call(
        kernel,
        out_shape=jax.ShapeDtypeStruct((B, 1), jnp.float32),
        grid=(grid_b,),
        in_specs=[
            pl.BlockSpec((tb, S, P), lambda b: (b, 0, 0)),   # rate slab (native dtype)
            pl.BlockSpec((tb, P), lambda b: (b, 0)),         # counts*mask (f32, 2D)
            pl.BlockSpec((tb, P), lambda b: (b, 0)),         # mask        (f32, 2D)
        ],
        out_specs=pl.BlockSpec((tb, 1), lambda b: (b, 0)),
        compiler_params=pltpu.CompilerParams(
            dimension_semantics=("parallel",),
            vmem_limit_bytes=vmem_limit),
    )(rate, wc, mask_f)

    return out.reshape(B) + lgk_masked_sum


# ----------------------------------------------------------------------------
# KL terms (plain JAX glue; match torch.distributions.kl formulas exactly).
# ----------------------------------------------------------------------------
def _kl_gamma_gamma(q_conc, q_rate, p_conc, p_rate):
    # torch._kl_gamma_gamma(p=q_bg, q=p_bg)
    t1 = p_conc * jnp.log(q_rate / p_rate)
    t2 = gammaln(p_conc) - gammaln(q_conc)
    t3 = (q_conc - p_conc) * digamma(q_conc)
    t4 = (p_rate - q_rate) * (q_conc / q_rate)
    return t1 + t2 + t3 + t4


def _kl_dirichlet_dirichlet(q_conc, p_conc):
    # torch._kl_dirichlet_dirichlet(p=q_p, q=p_p)
    sum_q = q_conc.sum(-1)
    sum_p = p_conc.sum(-1)
    t1 = gammaln(sum_q) - gammaln(sum_p)
    t2 = (gammaln(q_conc) - gammaln(p_conc)).sum(-1)
    t3 = q_conc - p_conc
    t4 = digamma(q_conc) - digamma(sum_q)[..., None]
    return t1 - t2 + (t3 * t4).sum(-1)


# ----------------------------------------------------------------------------
# Full UnetLoss.forward equivalent.
# ----------------------------------------------------------------------------
@jax.jit
def unet_loss_forward(rate, counts, q_p_concentration, q_bg_concentration,
                      q_bg_rate, masks, dirichlet_prior_concentration):
    # kl_p: Dirichlet(q_p) || Dirichlet(center-focused prior), shape (B,)
    p_p_conc = jnp.broadcast_to(dirichlet_prior_concentration[None, :],
                                q_p_concentration.shape)
    kl_p = _kl_dirichlet_dirichlet(q_p_concentration, p_p_conc)

    # kl_bg: Gamma(q_bg) || Gamma(1, 1), summed over last dim, shape (B,)
    kl_bg = _kl_gamma_gamma(q_bg_concentration, q_bg_rate,
                            jnp.float32(P_BG_CONC), jnp.float32(P_BG_RATE))
    kl_bg = kl_bg.sum(-1)

    kl_terms = kl_p * P_P_SCALE + kl_bg * P_BG_SCALE

    # Poisson negative log-likelihood (Pallas kernel hot path)
    masks_2d = jnp.squeeze(masks, -1)
    neg_ll_batch = poisson_neg_ll(rate, counts, masks_2d, EPS)

    batch_loss = neg_ll_batch + kl_terms
    total_loss = batch_loss.mean()
    return (total_loss,
            neg_ll_batch.mean(),
            kl_terms.mean(),
            kl_bg.mean() * P_BG_SCALE,
            kl_p.mean() * P_P_SCALE)


if __name__ == "__main__":
    key = jax.random.PRNGKey(0)
    B, S = 2, 8                 # batch, Monte-Carlo samples
    P = PROFILE_SIZE            # 1323 flattened shoebox pixels (3*21*21)

    k1, k2, k3, k4, k5, k6 = jax.random.split(key, 6)
    rate = jax.random.uniform(k1, (B, S, P), jnp.float32, 0.1, 5.0)
    counts = jnp.floor(jax.random.uniform(k2, (B, P), jnp.float32, 0.0, 10.0))
    q_p_concentration = jax.random.uniform(k3, (B, P), jnp.float32, 0.5, 2.0)
    q_bg_concentration = jax.random.uniform(k4, (B, 1), jnp.float32, 0.5, 2.0)
    q_bg_rate = jax.random.uniform(k5, (B, 1), jnp.float32, 0.5, 2.0)
    masks = (jax.random.uniform(k6, (B, P, 1), jnp.float32) > 0.1).astype(jnp.float32)

    # Deterministic buffer init matching UnetLoss.__init__ defaults
    # (use_center_focused_prior=True, prior_center_alpha=5.0, decay 0.2, peak 0.05)
    dirichlet_prior = create_center_focused_dirichlet_prior(
        shape=PRIOR_SHAPE, base_alpha=0.1, center_alpha=5.0,
        decay_factor=0.2, peak_percentage=0.05)

    outs = unet_loss_forward(rate, counts, q_p_concentration,
                             q_bg_concentration, q_bg_rate, masks,
                             dirichlet_prior)
    outs = jax.block_until_ready(outs)
    total_loss, neg_ll_mean, kl_terms_mean, kl_bg_mean, kl_p_mean = outs
    assert all(jnp.isfinite(o) for o in outs)
    print("KERNEL_OK")
</pallas_src>

<mosaic_0001>
module attributes {stable_mosaic.version = 11 : i64} {
  func.func @_poisson_nll_kernel(%arg0: i32, %arg1: memref<2x8x1323xf32, #tpu.memory_space<vmem>>, %arg2: memref<2x1323xf32, #tpu.memory_space<vmem>>, %arg3: memref<2x1323xf32, #tpu.memory_space<vmem>>, %arg4: memref<2x1xf32, #tpu.memory_space<vmem>>) attributes {dimension_semantics = [#tpu.dimension_semantics<parallel>], iteration_bounds = array<i64: 1>, scalar_prefetch = 0 : i64, scratch_operands = 0 : i64, tpu.core_type = #tpu.core_type<tc>, window_params = [{transform_indices = @transform_0, window_bounds = array<i64: 2, 8, 1323>}, {transform_indices = @transform_1, window_bounds = array<i64: 2, 1323>}, {transform_indices = @transform_2, window_bounds = array<i64: 2, 1323>}, {transform_indices = @transform_3, window_bounds = array<i64: 2, 1>}]} {
    %c0 = arith.constant 0 : index
    %c0_0 = arith.constant 0 : index
    %c0_1 = arith.constant 0 : index
    %0 = vector.load %arg1[%c0, %c0_0, %c0_1] : memref<2x8x1323xf32, #tpu.memory_space<vmem>>, vector<2x8x1323xf32>
    %cst = arith.constant 9.99999974E-6 : f32
    %1 = vector.broadcast %cst : f32 to vector<2x8x1323xf32>
    %2 = arith.addf %0, %1 : vector<2x8x1323xf32>
    %3 = math.log %2 : vector<2x8x1323xf32>
    %cst_2 = arith.constant dense<0.000000e+00> : vector<2x1323xf32>
    %4 = vector.multi_reduction <add>, %3, %cst_2 [1] : vector<2x8x1323xf32> to vector<2x1323xf32>
    %cst_3 = arith.constant dense<0.000000e+00> : vector<2x1323xf32>
    %5 = vector.multi_reduction <add>, %0, %cst_3 [1] : vector<2x8x1323xf32> to vector<2x1323xf32>
    %cst_4 = arith.constant 8.000000e-05 : f32
    %6 = vector.broadcast %cst_4 : f32 to vector<2x1323xf32>
    %7 = arith.addf %5, %6 : vector<2x1323xf32>
    %c0_5 = arith.constant 0 : index
    %c0_6 = arith.constant 0 : index
    %8 = vector.load %arg2[%c0_5, %c0_6] : memref<2x1323xf32, #tpu.memory_space<vmem>>, vector<2x1323xf32>
    %9 = arith.mulf %8, %4 : vector<2x1323xf32>
    %c0_7 = arith.constant 0 : index
    %c0_8 = arith.constant 0 : index
    %10 = vector.load %arg3[%c0_7, %c0_8] : memref<2x1323xf32, #tpu.memory_space<vmem>>, vector<2x1323xf32>
    %11 = arith.mulf %10, %7 : vector<2x1323xf32>
    %12 = arith.subf %9, %11 : vector<2x1323xf32>
    %cst_9 = arith.constant dense<0.000000e+00> : vector<2xf32>
    %13 = vector.multi_reduction <add>, %12, %cst_9 [1] : vector<2x1323xf32> to vector<2xf32>
    %14 = vector.shape_cast %13 : vector<2xf32> to vector<2x1xf32>
    %cst_10 = arith.constant -1.250000e-01 : f32
    %15 = vector.broadcast %cst_10 : f32 to vector<2x1xf32>
    %16 = arith.mulf %15, %14 : vector<2x1xf32>
    %c0_11 = arith.constant 0 : index
    %c0_12 = arith.constant 0 : index
    %17 = vector.load %arg4[%c0_11, %c0_12] : memref<2x1xf32, #tpu.memory_space<vmem>>, vector<2x1xf32>
    tpu.vector_store %arg4[%c0_11, %c0_12], %16 {strides = array<i32>} : memref<2x1xf32, #tpu.memory_space<vmem>>, vector<2x1xf32>,
    return
  }
  func.func @transform_0(%arg0: i32) -> (i32, i32, i32) {
    %c0_i32 = arith.constant 0 : i32
    %c0_i32_0 = arith.constant 0 : i32
    %c0_i32_1 = arith.constant 0 : i32
    return %arg0, %c0_i32, %c0_i32_0 : i32, i32, i32
  }
  func.func @transform_1(%arg0: i32) -> (i32, i32) {
    %c0_i32 = arith.constant 0 : i32
    %c0_i32_0 = arith.constant 0 : i32
    return %arg0, %c0_i32 : i32, i32
  }
  func.func @transform_2(%arg0: i32) -> (i32, i32) {
    %c0_i32 = arith.constant 0 : i32
    %c0_i32_0 = arith.constant 0 : i32
    return %arg0, %c0_i32 : i32, i32
  }
  func.func @transform_3(%arg0: i32) -> (i32, i32) {
    %c0_i32 = arith.constant 0 : i32
    %c0_i32_0 = arith.constant 0 : i32
    return %arg0, %c0_i32 : i32, i32
  }
}

</mosaic_0001>

<llo_original>
// kernel: unet_loss_forward.1
$region0: #{unet_loss_forward.1}
  #allocation0 [shape = 'u32[]', space=smem, size = 0x4, offset = 0x4, fixed_abs, tag = 'smem constant byte address 0x4 - core index']
  #allocation1 [shape = 'u32[144,128]{1,0:T(1,128)}', space=vmem, size = 0x12000, scoped, tag = 'internal scratch']
  %s0 = inlined_call_operand.vmem [shape: f32[2,8,1323], index: 0, kind: input, shape index: {}]
  %s1 = inlined_call_operand.vmem [shape: f32[2,1323], index: 1, kind: input, shape index: {}]
  %s2 = inlined_call_operand.vmem [shape: f32[2,1323], index: 2, kind: input, shape index: {}]
  %s3 = inlined_call_operand.vmem [shape: f32[2,1], index: 3, kind: output, shape index: {}]
  %s4 = sld [smem:[#allocation0]]
  $region22: #{unet_loss_forward.1} parent=0
    _
  %s6 = ssub.s32 1, %s4
  %s7 = scalar_select 0, %s6, %s4
  // Predicated region
  $region2: #{unet_loss_forward.1} parent=0 // pred_check
    _
  $region3: #{unet_loss_forward.1} parent=0 // pred_check_branch
    %9 = sbr.rel (0) target = $region5
  $region4: #{unet_loss_forward.1} parent=0 // pred_region
    _
  $region5: #{unet_loss_forward.1} parent=0 // pred_fallthru
    _
  // Predicated region
  $region6: #{unet_loss_forward.1} parent=0 // pred_check
    _
  $region7: #{unet_loss_forward.1} parent=0 // pred_check_branch
    %11 = sbr.rel (0) target = $region9
  $region8: #{unet_loss_forward.1} parent=0 // pred_region
    _
  $region9: #{unet_loss_forward.1} parent=0 // pred_fallthru
    _
  // Predicated region
  $region10: #{unet_loss_forward.1} parent=0 // pred_check
    _
  $region11: #{unet_loss_forward.1} parent=0 // pred_check_branch
    %13 = sbr.rel (0) target = $region13
  $region12: #{unet_loss_forward.1} parent=0 // pred_region
    _
  $region13: #{unet_loss_forward.1} parent=0 // pred_fallthru
    _
  %v14 = vld [vmem:[%s0] sm:$0xff]
  %v15 = vld [vmem:[%s0 + $0x8] sm:$0xff]
  %v16 = vld [vmem:[%s0 + $0x10] sm:$0xff]
  %v17 = vld [vmem:[%s0 + $0x18] sm:$0xff]
  %v18 = vld [vmem:[%s0 + $0x20] sm:$0xff]
  %v19 = vld [vmem:[%s0 + $0x28] sm:$0xff]
  %v20 = vld [vmem:[%s0 + $0x30] sm:$0xff]
  %v21 = vld [vmem:[%s0 + $0x38] sm:$0xff]
  %v22 = vld [vmem:[%s0 + $0x40] sm:$0xff]
  %v23 = vld [vmem:[%s0 + $0x48] sm:$0xff]
  %v24 = vld [vmem:[%s0 + $0x50] sm:$0xff]
  %v25 = vld [vmem:[%s0 + $0x58] sm:$0xff]
  %v26 = vld [vmem:[%s0 + $0x60] sm:$0xff]
  %v27 = vld [vmem:[%s0 + $0x68] sm:$0xff]
  %v28 = vld [vmem:[%s0 + $0x70] sm:$0xff]
  %v29 = vld [vmem:[%s0 + $0x78] sm:$0xff]
  %v30 = vld [vmem:[%s0 + $0x80] sm:$0xff]
  %v31 = vld [vmem:[%s0 + $0x88] sm:$0xff]
  %v32 = vld [vmem:[%s0 + $0x90] sm:$0xff]
  %v33 = vld [vmem:[%s0 + $0x98] sm:$0xff]
  %v34 = vld [vmem:[%s0 + $0xa0] sm:$0xff]
  %v35 = vld [vmem:[%s0 + $0xa8] sm:$0xff]
  %v36 = vadd.f32 %v14, 1e-05
  %v37 = vadd.f32 %v15, 1e-05
  %v38 = vadd.f32 %v16, 1e-05
  %v39 = vadd.f32 %v17, 1e-05
  %v40 = vadd.f32 %v18, 1e-05
  %v41 = vadd.f32 %v19, 1e-05
  %v42 = vadd.f32 %v20, 1e-05
  %v43 = vadd.f32 %v21, 1e-05
  %v44 = vadd.f32 %v22, 1e-05
  %v45 = vadd.f32 %v23, 1e-05
  %v46 = vadd.f32 %v24, 1e-05
  %v47 = vadd.f32 %v25, 1e-05
  %v48 = vadd.f32 %v26, 1e-05
  %v49 = vadd.f32 %v27, 1e-05
  %v50 = vadd.f32 %v28, 1e-05
  %v51 = vadd.f32 %v29, 1e-05
  %v52 = vadd.f32 %v30, 1e-05
  %v53 = vadd.f32 %v31, 1e-05
  %v54 = vadd.f32 %v32, 1e-05
  %v55 = vadd.f32 %v33, 1e-05
  %v56 = vadd.f32 %v34, 1e-05
  %v57 = vadd.f32 %v35, 1e-05
  %v58 = vlog2.pop %v36
  %v59 = vmul.f32 %v58, 0.6931472
  %v60 = vlog2.pop %v37
  %v61 = vmul.f32 %v60, 0.6931472
  %v62 = vlog2.pop %v38
  %v63 = vmul.f32 %v62, 0.6931472
  %v64 = vlog2.pop %v39
  %v65 = vmul.f32 %v64, 0.6931472
  %v66 = vlog2.pop %v40
  %v67 = vmul.f32 %v66, 0.6931472
  %v68 = vlog2.pop %v41
  %v69 = vmul.f32 %v68, 0.6931472
  %v70 = vlog2.pop %v42
  %v71 = vmul.f32 %v70, 0.6931472
  %v72 = vlog2.pop %v43
  %v73 = vmul.f32 %v72, 0.6931472
  %v74 = vlog2.pop %v44
  %v75 = vmul.f32 %v74, 0.6931472
  %v76 = vlog2.pop %v45
  %v77 = vmul.f32 %v76, 0.6931472
  %v78 = vlog2.pop %v46
  %v79 = vmul.f32 %v78, 0.6931472
  %v80 = vlog2.pop %v47
  %v81 = vmul.f32 %v80, 0.6931472
  %v82 = vlog2.pop %v48
  %v83 = vmul.f32 %v82, 0.6931472
  %v84 = vlog2.pop %v49
  %v85 = vmul.f32 %v84, 0.6931472
  %v86 = vlog2.pop %v50
  %v87 = vmul.f32 %v86, 0.6931472
  %v88 = vlog2.pop %v51
  %v89 = vmul.f32 %v88, 0.6931472
  %v90 = vlog2.pop %v52
  %v91 = vmul.f32 %v90, 0.6931472
  %v92 = vlog2.pop %v53
  %v93 = vmul.f32 %v92, 0.6931472
  %v94 = vlog2.pop %v54
  %v95 = vmul.f32 %v94, 0.6931472
  %v96 = vlog2.pop %v55
  %v97 = vmul.f32 %v96, 0.6931472
  %v98 = vlog2.pop %v56
  %v99 = vmul.f32 %v98, 0.6931472
  %v100 = vlog2.pop %v57
  %v101 = vmul.f32 %v100, 0.6931472
  %v102 = vrot.slane %v59, 4
  %v103 = vadd.f32 %v59, %v102
  %v104 = vrot.slane %v103, 2
  %v105 = vadd.f32 %v103, %v104
  %v106 = vrot.slane %v105, 1
  %v107 = vadd.f32 %v105, %v106
  %v108 = vrot.slane %v61, 4
  %v109 = vadd.f32 %v61, %v108
  %v110 = vrot.slane %v109, 2
  %v111 = vadd.f32 %v109, %v110
  %v112 = vrot.slane %v111, 1
  %v113 = vadd.f32 %v111, %v112
  %v114 = vrot.slane %v63, 4
  %v115 = vadd.f32 %v63, %v114
  %v116 = vrot.slane %v115, 2
  %v117 = vadd.f32 %v115, %v116
  %v118 = vrot.slane %v117, 1
  %v119 = vadd.f32 %v117, %v118
  %v120 = vrot.slane %v65, 4
  %v121 = vadd.f32 %v65, %v120
  %v122 = vrot.slane %v121, 2
  %v123 = vadd.f32 %v121, %v122
  %v124 = vrot.slane %v123, 1
  %v125 = vadd.f32 %v123, %v124
  %v126 = vrot.slane %v67, 4
  %v127 = vadd.f32 %v67, %v126
  %v128 = vrot.slane %v127, 2
  %v129 = vadd.f32 %v127, %v128
  %v130 = vrot.slane %v129, 1
  %v131 = vadd.f32 %v129, %v130
  %v132 = vrot.slane %v69, 4
  %v133 = vadd.f32 %v69, %v132
  %v134 = vrot.slane %v133, 2
  %v135 = vadd.f32 %v133, %v134
  %v136 = vrot.slane %v135, 1
  %v137 = vadd.f32 %v135, %v136
  %v138 = vrot.slane %v71, 4
  %v139 = vadd.f32 %v71, %v138
  %v140 = vrot.slane %v139, 2
  %v141 = vadd.f32 %v139, %v140
  %v142 = vrot.slane %v141, 1
  %v143 = vadd.f32 %v141, %v142
  %v144 = vrot.slane %v73, 4
  %v145 = vadd.f32 %v73, %v144
  %v146 = vrot.slane %v145, 2
  %v147 = vadd.f32 %v145, %v146
  %v148 = vrot.slane %v147, 1
  %v149 = vadd.f32 %v147, %v148
  %v150 = vrot.slane %v75, 4
  %v151 = vadd.f32 %v75, %v150
  %v152 = vrot.slane %v151, 2
  %v153 = vadd.f32 %v151, %v152
  %v154 = vrot.slane %v153, 1
  %v155 = vadd.f32 %v153, %v154
  %v156 = vrot.slane %v77, 4
  %v157 = vadd.f32 %v77, %v156
  %v158 = vrot.slane %v157, 2
  %v159 = vadd.f32 %v157, %v158
  %v160 = vrot.slane %v159, 1
  %v161 = vadd.f32 %v159, %v160
  %vm162 = vcmask 351232
  %v163 = vsel %vm162, %v79, 0.0
  %v164 = vrot.slane %v163, 4
  %v165 = vadd.f32 %v163, %v164
  %v166 = vrot.slane %v165, 2
  %v167 = vadd.f32 %v165, %v166
  %v168 = vrot.slane %v167, 1
  %v169 = vadd.f32 %v167, %v168
  %v170 = vrot.slane %v81, 4
  %v171 = vadd.f32 %v81, %v170
  %v172 = vrot.slane %v171, 2
  %v173 = vadd.f32 %v171, %v172
  %v174 = vrot.slane %v173, 1
  %v175 = vadd.f32 %v173, %v174
  %v176 = vrot.slane %v83, 4
  %v177 = vadd.f32 %v83, %v176
  %v178 = vrot.slane %v177, 2
  %v179 = vadd.f32 %v177, %v178
  %v180 = vrot.slane %v179, 1
  %v181 = vadd.f32 %v179, %v180
  %v182 = vrot.slane %v85, 4
  %v183 = vadd.f32 %v85, %v182
  %v184 = vrot.slane %v183, 2
  %v185 = vadd.f32 %v183, %v184
  %v186 = vrot.slane %v185, 1
  %v187 = vadd.f32 %v185, %v186
  %v188 = vrot.slane %v87, 4
  %v189 = vadd.f32 %v87, %v188
  %v190 = vrot.slane %v189, 2
  %v191 = vadd.f32 %v189, %v190
  %v192 = vrot.slane %v191, 1
  %v193 = vadd.f32 %v191, %v192
  %v194 = vrot.slane %v89, 4
  %v195 = vadd.f32 %v89, %v194
  %v196 = vrot.slane %v195, 2
  %v197 = vadd.f32 %v195, %v196
  %v198 = vrot.slane %v197, 1
  %v199 = vadd.f32 %v197, %v198
  %v200 = vrot.slane %v91, 4
  %v201 = vadd.f32 %v91, %v200
  %v202 = vrot.slane %v201, 2
  %v203 = vadd.f32 %v201, %v202
  %v204 = vrot.slane %v203, 1
  %v205 = vadd.f32 %v203, %v204
  %v206 = vrot.slane %v93, 4
  %v207 = vadd.f32 %v93, %v206
  %v208 = vrot.slane %v207, 2
  %v209 = vadd.f32 %v207, %v208
  %v210 = vrot.slane %v209, 1
  %v211 = vadd.f32 %v209, %v210
  %v212 = vrot.slane %v95, 4
  %v213 = vadd.f32 %v95, %v212
  %v214 = vrot.slane %v213, 2
  %v215 = vadd.f32 %v213, %v214
  %v216 = vrot.slane %v215, 1
  %v217 = vadd.f32 %v215, %v216
  %v218 = vrot.slane %v97, 4
  %v219 = vadd.f32 %v97, %v218
  %v220 = vrot.slane %v219, 2
  %v221 = vadd.f32 %v219, %v220
  %v222 = vrot.slane %v221, 1
  %v223 = vadd.f32 %v221, %v222
  %v224 = vrot.slane %v99, 4
  %v225 = vadd.f32 %v99, %v224
  %v226 = vrot.slane %v225, 2
  %v227 = vadd.f32 %v225, %v226
  %v228 = vrot.slane %v227, 1
  %v229 = vadd.f32 %v227, %v228
  %v230 = vsel %vm162, %v101, 0.0
  %v231 = vrot.slane %v230, 4
  %v232 = vadd.f32 %v230, %v231
  %v233 = vrot.slane %v232, 2
  %v234 = vadd.f32 %v232, %v233
  %v235 = vrot.slane %v234, 1
  %v236 = vadd.f32 %v234, %v235
  %v237 = vrot.slane %v14, 4
  %v238 = vadd.f32 %v14, %v237
  %v239 = vrot.slane %v238, 2
  %v240 = vadd.f32 %v238, %v239
  %v241 = vrot.slane %v240, 1
  %v242 = vadd.f32 %v240, %v241
  %v243 = vrot.slane %v15, 4
  %v244 = vadd.f32 %v15, %v243
  %v245 = vrot.slane %v244, 2
  %v246 = vadd.f32 %v244, %v245
  %v247 = vrot.slane %v246, 1
  %v248 = vadd.f32 %v246, %v247
  %v249 = vrot.slane %v16, 4
  %v250 = vadd.f32 %v16, %v249
  %v251 = vrot.slane %v250, 2
  %v252 = vadd.f32 %v250, %v251
  %v253 = vrot.slane %v252, 1
  %v254 = vadd.f32 %v252, %v253
  %v255 = vrot.slane %v17, 4
  %v256 = vadd.f32 %v17, %v255
  %v257 = vrot.slane %v256, 2
  %v258 = vadd.f32 %v256, %v257
  %v259 = vrot.slane %v258, 1
  %v260 = vadd.f32 %v258, %v259
  %v261 = vrot.slane %v18, 4
  %v262 = vadd.f32 %v18, %v261
  %v263 = vrot.slane %v262, 2
  %v264 = vadd.f32 %v262, %v263
  %v265 = vrot.slane %v264, 1
  %v266 = vadd.f32 %v264, %v265
  %v267 = vrot.slane %v19, 4
  %v268 = vadd.f32 %v19, %v267
  %v269 = vrot.slane %v268, 2
  %v270 = vadd.f32 %v268, %v269
  %v271 = vrot.slane %v270, 1
  %v272 = vadd.f32 %v270, %v271
  %v273 = vrot.slane %v20, 4
  %v274 = vadd.f32 %v20, %v273
  %v275 = vrot.slane %v274, 2
  %v276 = vadd.f32 %v274, %v275
  %v277 = vrot.slane %v276, 1
  %v278 = vadd.f32 %v276, %v277
  %v279 = vrot.slane %v21, 4
  %v280 = vadd.f32 %v21, %v279
  %v281 = vrot.slane %v280, 2
  %v282 = vadd.f32 %v280, %v281
  %v283 = vrot.slane %v282, 1
  %v284 = vadd.f32 %v282, %v283
  %v285 = vrot.slane %v22, 4
  %v286 = vadd.f32 %v22, %v285
  %v287 = vrot.slane %v286, 2
  %v288 = vadd.f32 %v286, %v287
  %v289 = vrot.slane %v288, 1
  %v290 = vadd.f32 %v288, %v289
  %v291 = vrot.slane %v23, 4
  %v292 = vadd.f32 %v23, %v291
  %v293 = vrot.slane %v292, 2
  %v294 = vadd.f32 %v292, %v293
  %v295 = vrot.slane %v294, 1
  %v296 = vadd.f32 %v294, %v295
  %v297 = vsel %vm162, %v24, 0.0
  %v298 = vrot.slane %v297, 4
  %v299 = vadd.f32 %v297, %v298
  %v300 = vrot.slane %v299, 2
  %v301 = vadd.f32 %v299, %v300
  %v302 = vrot.slane %v301, 1
  %v303 = vadd.f32 %v301, %v302
  %v304 = vrot.slane %v25, 4
  %v305 = vadd.f32 %v25, %v304
  %v306 = vrot.slane %v305, 2
  %v307 = vadd.f32 %v305, %v306
  %v308 = vrot.slane %v307, 1
  %v309 = vadd.f32 %v307, %v308
  %v310 = vrot.slane %v26, 4
  %v311 = vadd.f32 %v26, %v310
  %v312 = vrot.slane %v311, 2
  %v313 = vadd.f32 %v311, %v312
  %v314 = vrot.slane %v313, 1
  %v315 = vadd.f32 %v313, %v314
  %v316 = vrot.slane %v27, 4
  %v317 = vadd.f32 %v27, %v316
  %v318 = vrot.slane %v317, 2
  %v319 = vadd.f32 %v317, %v318
  %v320 = vrot.slane %v319, 1
  %v321 = vadd.f32 %v319, %v320
  %v322 = vrot.slane %v28, 4
  %v323 = vadd.f32 %v28, %v322
  %v324 = vrot.slane %v323, 2
  %v325 = vadd.f32 %v323, %v324
  %v326 = vrot.slane %v325, 1
  %v327 = vadd.f32 %v325, %v326
  %v328 = vrot.slane %v29, 4
  %v329 = vadd.f32 %v29, %v328
  %v330 = vrot.slane %v329, 2
  %v331 = vadd.f32 %v329, %v330
  %v332 = vrot.slane %v331, 1
  %v333 = vadd.f32 %v331, %v332
  %v334 = vrot.slane %v30, 4
  %v335 = vadd.f32 %v30, %v334
  %v336 = vrot.slane %v335, 2
  %v337 = vadd.f32 %v335, %v336
  %v338 = vrot.slane %v337, 1
  %v339 = vadd.f32 %v337, %v338
  %v340 = vrot.slane %v31, 4
  %v341 = vadd.f32 %v31, %v340
  %v342 = vrot.slane %v341, 2
  %v343 = vadd.f32 %v341, %v342
  %v344 = vrot.slane %v343, 1
  %v345 = vadd.f32 %v343, %v344
  %v346 = vrot.slane %v32, 4
  %v347 = vadd.f32 %v32, %v346
  %v348 = vrot.slane %v347, 2
  %v349 = vadd.f32 %v347, %v348
  %v350 = vrot.slane %v349, 1
  %v351 = vadd.f32 %v349, %v350
  %v352 = vrot.slane %v33, 4
  %v353 = vadd.f32 %v33, %v352
  %v354 = vrot.slane %v353, 2
  %v355 = vadd.f32 %v353, %v354
  %v356 = vrot.slane %v355, 1
  %v357 = vadd.f32 %v355, %v356
  %v358 = vrot.slane %v34, 4
  %v359 = vadd.f32 %v34, %v358
  %v360 = vrot.slane %v359, 2
  %v361 = vadd.f32 %v359, %v360
  %v362 = vrot.slane %v361, 1
  %v363 = vadd.f32 %v361, %v362
  %v364 = vsel %vm162, %v35, 0.0
  %v365 = vrot.slane %v364, 4
  %v366 = vadd.f32 %v364, %v365
  %v367 = vrot.slane %v366, 2
  %v368 = vadd.f32 %v366, %v367
  %v369 = vrot.slane %v368, 1
  %v370 = vadd.f32 %v368, %v369
  %v371 = vadd.f32 %v242, 8e-05
  %v372 = vadd.f32 %v248, 8e-05
  %v373 = vadd.f32 %v254, 8e-05
  %v374 = vadd.f32 %v260, 8e-05
  %v375 = vadd.f32 %v266, 8e-05
  %v376 = vadd.f32 %v272, 8e-05
  %v377 = vadd.f32 %v278, 8e-05
  %v378 = vadd.f32 %v284, 8e-05
  %v379 = vadd.f32 %v290, 8e-05
  %v380 = vadd.f32 %v296, 8e-05
  %v381 = vadd.f32 %v303, 8e-05
  %v382 = vadd.f32 %v309, 8e-05
  %v383 = vadd.f32 %v315, 8e-05
  %v384 = vadd.f32 %v321, 8e-05
  %v385 = vadd.f32 %v327, 8e-05
  %v386 = vadd.f32 %v333, 8e-05
  %v387 = vadd.f32 %v339, 8e-05
  %v388 = vadd.f32 %v345, 8e-05
  %v389 = vadd.f32 %v351, 8e-05
  %v390 = vadd.f32 %v357, 8e-05
  %v391 = vadd.f32 %v363, 8e-05
  %v392 = vadd.f32 %v370, 8e-05
  %v393 = vld [vmem:[%s1] sm:$0xff]
  %v394 = vld [vmem:[%s1 + $0x8] sm:$0xff]
  %v395 = vld [vmem:[%s1 + $0x10] sm:$0x3f]
  %v418 = vcombine.low %v107, %v113
  %v419 = vcombine.low %v119, %v125
  %v421 = vunpack.c.l.s4 1983009808
  %v422 = vunpack.c.0.s8 %v421
  %v423 = vlaneseq
  %v424 = vshrl.u32 %v423, 7
  %v425 = vsub.s32 %v422, %v424
  %v426 = vrot.slane %v418, %v425
  %v428 = vunpack.c.l.s4 1983009808
  %v429 = vunpack.c.0.s8 %v428
  %v430 = vlaneseq
  %v431 = vshrl.u32 %v430, 7
  %v432 = vsub.s32 %v429, %v431
  %v433 = vrot.slane %v419, %v432
  %v434 = vcombine.low %v426, %v433
  %v435 = vcombine.low %v131, %v137
  %v436 = vcombine.low %v143, %v149
  %v438 = vunpack.c.l.s4 1983009808
  %v439 = vunpack.c.0.s8 %v438
  %v440 = vlaneseq
  %v441 = vshrl.u32 %v440, 7
  %v442 = vsub.s32 %v439, %v441
  %v443 = vrot.slane %v435, %v442
  %v445 = vunpack.c.l.s4 1983009808
  %v446 = vunpack.c.0.s8 %v445
  %v447 = vlaneseq
  %v448 = vshrl.u32 %v447, 7
  %v449 = vsub.s32 %v446, %v448
  %v450 = vrot.slane %v436, %v449
  %v451 = vcombine.low %v443, %v450
  %v452 = vcombine.low %v155, %v161
  %v454 = vunpack.c.l.s4 1983009808
  %v455 = vunpack.c.0.s8 %v454
  %v456 = vlaneseq
  %v457 = vshrl.u32 %v456, 7
  %v458 = vsub.s32 %v455, %v457
  %v459 = vrot.slane %v452, %v458
  %v461 = vunpack.c.l.s4 1983009808
  %v462 = vunpack.c.0.s8 %v461
  %v463 = vlaneseq
  %v464 = vshrl.u32 %v463, 7
  %v465 = vsub.s32 %v462, %v464
  %v466 = vrot.slane %v169, %v465
  %v467 = vcombine.low %v459, %v466
  %v468 = vcombine.low %v175, %v181
  %v469 = vcombine.low %v187, %v193
  %v471 = vunpack.c.l.s4 1983009808
  %v472 = vunpack.c.0.s8 %v471
  %v473 = vlaneseq
  %v474 = vshrl.u32 %v473, 7
  %v475 = vsub.s32 %v472, %v474
  %v476 = vrot.slane %v468, %v475
  %v478 = vunpack.c.l.s4 1983009808
  %v479 = vunpack.c.0.s8 %v478
  %v480 = vlaneseq
  %v481 = vshrl.u32 %v480, 7
  %v482 = vsub.s32 %v479, %v481
  %v483 = vrot.slane %v469, %v482
  %v484 = vcombine.low %v476, %v483
  %v485 = vcombine.low %v199, %v205
  %v486 = vcombine.low %v211, %v217
  %v488 = vunpack.c.l.s4 1983009808
  %v489 = vunpack.c.0.s8 %v488
  %v490 = vlaneseq
  %v491 = vshrl.u32 %v490, 7
  %v492 = vsub.s32 %v489, %v491
  %v493 = vrot.slane %v485, %v492
  %v495 = vunpack.c.l.s4 1983009808
  %v496 = vunpack.c.0.s8 %v495
  %v497 = vlaneseq
  %v498 = vshrl.u32 %v497, 7
  %v499 = vsub.s32 %v496, %v498
  %v500 = vrot.slane %v486, %v499
  %v501 = vcombine.low %v493, %v500
  %v502 = vcombine.low %v223, %v229
  %v504 = vunpack.c.l.s4 1983009808
  %v505 = vunpack.c.0.s8 %v504
  %v506 = vlaneseq
  %v507 = vshrl.u32 %v506, 7
  %v508 = vsub.s32 %v505, %v507
  %v509 = vrot.slane %v502, %v508
  %v511 = vunpack.c.l.s4 1983009808
  %v512 = vunpack.c.0.s8 %v511
  %v513 = vlaneseq
  %v514 = vshrl.u32 %v513, 7
  %v515 = vsub.s32 %v512, %v514
  %v516 = vrot.slane %v236, %v515
  %v517 = vcombine.low %v509, %v516
  %vm518 = vcmask 1044484
  %v519 = vsel %vm518, %v434, %v434
  %vm520 = vcmask 1046534
  %v521 = vsel %vm520, %v434, %v519
  %v522 = vrot.slane %v484, 7
  %vm523 = vcmask 1041409
  %v524 = vsel %vm523, %v522, %v521
  %vm525 = vcmask 1043459
  %v526 = vsel %vm525, %v522, %v524
  %vm527 = vcmask 1045509
  %v528 = vsel %vm527, %v522, %v526
  %vm529 = vcmask 1047559
  %v530 = vsel %vm529, %v522, %v528
  %v531 = vsel %vm518, %v451, %v451
  %v532 = vsel %vm520, %v451, %v531
  %v533 = vrot.slane %v501, 7
  %v534 = vsel %vm523, %v533, %v532
  %v535 = vsel %vm525, %v533, %v534
  %v536 = vsel %vm527, %v533, %v535
  %v537 = vsel %vm529, %v533, %v536
  %v538 = vsel %vm518, %v467, %v467
  %v539 = vsel %vm520, %v467, %v538
  %v540 = vrot.slane %v517, 7
  %v541 = vsel %vm523, %v540, %v539
  %v542 = vsel %vm525, %v540, %v541
  %v543 = vsel %vm527, %v540, %v542
  %v544 = vsel %vm529, %v540, %v543
  %v548 = vmul.f32 %v393, %v530
  %v549 = vmul.f32 %v394, %v537
  %v550 = vmul.f32 %v395, %v544
  %v551 = vld [vmem:[%s2] sm:$0xff]
  %v552 = vld [vmem:[%s2 + $0x8] sm:$0xff]
  %v553 = vld [vmem:[%s2 + $0x10] sm:$0x3f]
  %v576 = vcombine.low %v371, %v372
  %v577 = vcombine.low %v373, %v374
  %v579 = vunpack.c.l.s4 1983009808
  %v580 = vunpack.c.0.s8 %v579
  %v581 = vlaneseq
  %v582 = vshrl.u32 %v581, 7
  %v583 = vsub.s32 %v580, %v582
  %v584 = vrot.slane %v576, %v583
  %v586 = vunpack.c.l.s4 1983009808
  %v587 = vunpack.c.0.s8 %v586
  %v588 = vlaneseq
  %v589 = vshrl.u32 %v588, 7
  %v590 = vsub.s32 %v587, %v589
  %v591 = vrot.slane %v577, %v590
  %v592 = vcombine.low %v584, %v591
  %v593 = vcombine.low %v375, %v376
  %v594 = vcombine.low %v377, %v378
  %v596 = vunpack.c.l.s4 1983009808
  %v597 = vunpack.c.0.s8 %v596
  %v598 = vlaneseq
  %v599 = vshrl.u32 %v598, 7
  %v600 = vsub.s32 %v597, %v599
  %v601 = vrot.slane %v593, %v600
  %v603 = vunpack.c.l.s4 1983009808
  %v604 = vunpack.c.0.s8 %v603
  %v605 = vlaneseq
  %v606 = vshrl.u32 %v605, 7
  %v607 = vsub.s32 %v604, %v606
  %v608 = vrot.slane %v594, %v607
  %v609 = vcombine.low %v601, %v608
  %v610 = vcombine.low %v379, %v380
  %v612 = vunpack.c.l.s4 1983009808
  %v613 = vunpack.c.0.s8 %v612
  %v614 = vlaneseq
  %v615 = vshrl.u32 %v614, 7
  %v616 = vsub.s32 %v613, %v615
  %v617 = vrot.slane %v610, %v616
  %v619 = vunpack.c.l.s4 1983009808
  %v620 = vunpack.c.0.s8 %v619
  %v621 = vlaneseq
  %v622 = vshrl.u32 %v621, 7
  %v623 = vsub.s32 %v620, %v622
  %v624 = vrot.slane %v381, %v623
  %v625 = vcombine.low %v617, %v624
  %v626 = vcombine.low %v382, %v383
  %v627 = vcombine.low %v384, %v385
  %v629 = vunpack.c.l.s4 1983009808
  %v630 = vunpack.c.0.s8 %v629
  %v631 = vlaneseq
  %v632 = vshrl.u32 %v631, 7
  %v633 = vsub.s32 %v630, %v632
  %v634 = vrot.slane %v626, %v633
  %v636 = vunpack.c.l.s4 1983009808
  %v637 = vunpack.c.0.s8 %v636
  %v638 = vlaneseq
  %v639 = vshrl.u32 %v638, 7
  %v640 = vsub.s32 %v637, %v639
  %v641 = vrot.slane %v627, %v640
  %v642 = vcombine.low %v634, %v641
  %v643 = vcombine.low %v386, %v387
  %v644 = vcombine.low %v388, %v389
  %v646 = vunpack.c.l.s4 1983009808
  %v647 = vunpack.c.0.s8 %v646
  %v648 = vlaneseq
  %v649 = vshrl.u32 %v648, 7
  %v650 = vsub.s32 %v647, %v649
  %v651 = vrot.slane %v643, %v650
  %v653 = vunpack.c.l.s4 1983009808
  %v654 = vunpack.c.0.s8 %v653
  %v655 = vlaneseq
  %v656 = vshrl.u32 %v655, 7
  %v657 = vsub.s32 %v654, %v656
  %v658 = vrot.slane %v644, %v657
  %v659 = vcombine.low %v651, %v658
  %v660 = vcombine.low %v390, %v391
  %v662 = vunpack.c.l.s4 1983009808
  %v663 = vunpack.c.0.s8 %v662
  %v664 = vlaneseq
  %v665 = vshrl.u32 %v664, 7
  %v666 = vsub.s32 %v663, %v665
  %v667 = vrot.slane %v660, %v666
  %v669 = vunpack.c.l.s4 1983009808
  %v670 = vunpack.c.0.s8 %v669
  %v671 = vlaneseq
  %v672 = vshrl.u32 %v671, 7
  %v673 = vsub.s32 %v670, %v672
  %v674 = vrot.slane %v392, %v673
  %v675 = vcombine.low %v667, %v674
  %v676 = vsel %vm518, %v592, %v592
  %v677 = vsel %vm520, %v592, %v676
  %v678 = vrot.slane %v642, 7
  %v679 = vsel %vm523, %v678, %v677
  %v680 = vsel %vm525, %v678, %v679
  %v681 = vsel %vm527, %v678, %v680
  %v682 = vsel %vm529, %v678, %v681
  %v683 = vsel %vm518, %v609, %v609
  %v684 = vsel %vm520, %v609, %v683
  %v685 = vrot.slane %v659, 7
  %v686 = vsel %vm523, %v685, %v684
  %v687 = vsel %vm525, %v685, %v686
  %v688 = vsel %vm527, %v685, %v687
  %v689 = vsel %vm529, %v685, %v688
  %v690 = vsel %vm518, %v625, %v625
  %v691 = vsel %vm520, %v625, %v690
  %v692 = vrot.slane %v675, 7
  %v693 = vsel %vm523, %v692, %v691
  %v694 = vsel %vm525, %v692, %v693
  %v695 = vsel %vm527, %v692, %v694
  %v696 = vsel %vm529, %v692, %v695
  %v700 = vmul.f32 %v551, %v682
  %v701 = vmul.f32 %v552, %v689
  %v702 = vmul.f32 %v553, %v696
  %v703 = vsub.f32 %v548, %v700
  %v704 = vsub.f32 %v549, %v701
  %v705 = vsub.f32 %v550, %v702
  %v709 = vcombine.high %v703, %v703
  %v711 = vunpack.c.l.s4 1983009808
  %v712 = vunpack.c.0.s8 %v711
  %v713 = vlaneseq
  %v714 = vshrl.u32 %v713, 7
  %v715 = vsub.s32 %v712, %v714
  %v716 = vrot.slane %v703, %v715
  %v718 = vunpack.c.l.s4 1983009808
  %v719 = vunpack.c.0.s8 %v718
  %v720 = vlaneseq
  %v721 = vshrl.u32 %v720, 7
  %v722 = vsub.s32 %v719, %v721
  %v723 = vrot.slane %v709, %v722
  %v724 = vcombine.high %v716, %v716
  %v725 = vcombine.high %v723, %v723
  %v726 = vcombine.high %v704, %v704
  %v728 = vunpack.c.l.s4 1983009808
  %v729 = vunpack.c.0.s8 %v728
  %v730 = vlaneseq
  %v731 = vshrl.u32 %v730, 7
  %v732 = vsub.s32 %v729, %v731
  %v733 = vrot.slane %v704, %v732
  %v735 = vunpack.c.l.s4 1983009808
  %v736 = vunpack.c.0.s8 %v735
  %v737 = vlaneseq
  %v738 = vshrl.u32 %v737, 7
  %v739 = vsub.s32 %v736, %v738
  %v740 = vrot.slane %v726, %v739
  %v741 = vcombine.high %v733, %v733
  %v742 = vcombine.high %v740, %v740
  %v743 = vcombine.high %v705, %v705
  %v745 = vunpack.c.l.s4 1983009808
  %v746 = vunpack.c.0.s8 %v745
  %v747 = vlaneseq
  %v748 = vshrl.u32 %v747, 7
  %v749 = vsub.s32 %v746, %v748
  %v750 = vrot.slane %v705, %v749
  %v752 = vunpack.c.l.s4 1983009808
  %v753 = vunpack.c.0.s8 %v752
  %v754 = vlaneseq
  %v755 = vshrl.u32 %v754, 7
  %v756 = vsub.s32 %v753, %v755
  %v757 = vrot.slane %v743, %v756
  %v758 = vcombine.high %v750, %v750
  %vm770 = vcmask 1041408
  %v771 = vsel %vm770, %v716, 0.0
  %v772 = vsel %vm770, %v724, 0.0
  %v773 = vadd.f32 %v771, %v772
  %v774 = vsel %vm770, %v723, 0.0
  %v775 = vadd.f32 %v773, %v774
  %v776 = vsel %vm770, %v725, 0.0
  %v777 = vadd.f32 %v775, %v776
  %v778 = vsel %vm770, %v733, 0.0
  %v779 = vadd.f32 %v777, %v778
  %v780 = vsel %vm770, %v741, 0.0
  %v781 = vadd.f32 %v779, %v780
  %v782 = vsel %vm770, %v740, 0.0
  %v783 = vadd.f32 %v781, %v782
  %v784 = vsel %vm770, %v742, 0.0
  %v785 = vadd.f32 %v783, %v784
  %v786 = vsel %vm770, %v750, 0.0
  %v787 = vadd.f32 %v785, %v786
  %v788 = vsel %vm770, %v758, 0.0
  %v789 = vadd.f32 %v787, %v788
  %vm790 = vcmask 345088
  %v791 = vsel %vm790, %v757, 0.0
  %v792 = vadd.f32 %v789, %v791
  %793 = vadd.xlane.f32.xlu0 %v792
  %v794 = vpop.xlane.xlu0 %793
  %v795 = vmul.f32 %v794, -0.125
  %vm796 = vcmask 1024
  %797 = vst.msk [vmem:[%s3] sm:$0x3] %vm796, %v795
  // Predicated region
  $region14: #{unet_loss_forward.1} parent=0 // pred_check
    _
  $region15: #{unet_loss_forward.1} parent=0 // pred_check_branch
    %799 = sbr.rel (0) target = $region17
  $region16: #{unet_loss_forward.1} parent=0 // pred_region
    _
  $region17: #{unet_loss_forward.1} parent=0 // pred_fallthru
    _
  // Predicated region
  $region18: #{unet_loss_forward.1} parent=0 // pred_check
    _
  $region19: #{unet_loss_forward.1} parent=0 // pred_check_branch
    %801 = sbr.rel (0) target = $region21
  $region20: #{unet_loss_forward.1} parent=0 // pred_region
    _
  $region21: #{unet_loss_forward.1} parent=0 // pred_fallthru
    _

</llo_original>
